<compile_context>
chip_gen: v7x
topology: tpu7x:2x2x1
jax: 0.10.0
libtpu: 0.0.40
codegen_flags: <defaults>
</compile_context>

<pallas_src>
import functools

import numpy as np
import jax
import jax.numpy as jnp
from jax.experimental import pallas as pl
from jax.experimental.pallas import tpu as pltpu

DROPOUT_RATE = 0.1
EPS = 1e-5            # torch.nn.BatchNorm1d default
LANE = 128            # TPU lane width

# drop iff uniform uint32 < threshold; P(drop) = threshold / 2**32.
# Plain Python int -> becomes a jaxpr literal, never a captured constant.
_DROP_THRESHOLD = int(round(DROPOUT_RATE * (1 << 32)))


def _fx_kernel(x_ref, w_ref, gamma_ref, beta_ref, seed_ref, o_ref, *,
               tile_h, total_h, use_hw_prng):
    # ---- Linear: z = x @ W^T (bias omitted: cancelled by train-mode BN) ----
    z = jnp.dot(x_ref[...], w_ref[...], preferred_element_type=jnp.float32)

    # ---- BatchNorm1d training stats (per feature -> exact under column tiling) ----
    n = z.shape[0]
    inv_n = 1.0 / n
    mean = jnp.sum(z, axis=0, keepdims=True) * inv_n
    mean_sq = jnp.sum(z * z, axis=0, keepdims=True) * inv_n
    var = jnp.maximum(mean_sq - mean * mean, 0.0)

    # gamma/beta arrive pre-scaled by 1/(1-p); fold rsqrt into a per-column scale.
    scale = gamma_ref[...] * jax.lax.rsqrt(var + EPS)      # (1, tile_h)
    shift = beta_ref[...] - mean * scale                   # (1, tile_h)
    y = jnp.maximum(z * scale + shift, 0.0)                # BN affine + ReLU

    # ---- Dropout (training semantics): keep iff bits >= threshold --------------
    # The 1/(1-p) keep-scale is already folded into gamma/beta (ReLU is
    # positive-homogeneous), so this is a single compare + select.
    if use_hw_prng:
        # Per-tile seed so the mask is independent of the tiling.
        pltpu.prng_seed(seed_ref[0] + pl.program_id(0))
        bits = pltpu.bitcast(pltpu.prng_random_bits(y.shape), jnp.uint32)
    else:
        # murmur3-fmix32 hash over the *global* element index (tiling-invariant).
        # TODO(synk): matches torch Dropout's Bernoulli distribution, not its RNG stream.
        rows = jax.lax.broadcasted_iota(jnp.int32, y.shape, 0)
        cols = jax.lax.broadcasted_iota(jnp.int32, y.shape, 1) + pl.program_id(0) * tile_h
        bits = (rows * total_h + cols).astype(jnp.uint32)
        bits = bits ^ (seed_ref[0].astype(jnp.uint32) * np.uint32(0x9E3779B9))
        bits = bits ^ (bits >> 16)
        bits = bits * np.uint32(0x85EBCA6B)
        bits = bits ^ (bits >> 13)
        bits = bits * np.uint32(0xC2B2AE35)
        bits = bits ^ (bits >> 16)

    o_ref[...] = jnp.where(bits >= _DROP_THRESHOLD, y, 0.0).astype(o_ref.dtype)


def _pick_tile_h(hp, b, k, cap=1024, budget_bytes=24 * 1024 * 1024):
    """Largest lane-multiple feature tile that divides Hp and fits the VMEM budget.

    Budget: resident bf16 x block + double-buffered bf16 W^T tile + double-buffered
    f32 output tile + double-buffered gamma/beta rows.  24 MiB keeps headroom under
    v7x's 32 MiB scoped default; v5e/v6e are roomier.
    """
    avail = budget_bytes - b * k * 2
    per_col = 2 * (k * 2) + 2 * (b * 4) + 2 * 2 * 4
    cap = min(cap, hp, max(LANE, (avail // per_col) // LANE * LANE))
    for cand in range(cap, LANE - 1, -LANE):
        if hp % cand == 0:
            return cand
    return LANE


def prepare_fx_params(w, gamma, beta, dropout_rate=DROPOUT_RATE):
    """One-time host-side parameter prep (hoisted out of the per-step path).

    w:     (h_dim, input_dim)  torch nn.Linear weight layout
    gamma: (h_dim,)            BatchNorm1d weight
    beta:  (h_dim,)            BatchNorm1d bias
    The Linear bias is intentionally not taken: train-mode BatchNorm subtracts the
    batch mean, which cancels it exactly.
    """
    h, k = w.shape
    hp = ((h + LANE - 1) // LANE) * LANE                 # lane-dense padded width
    keep_scale = 1.0 / (1.0 - dropout_rate)              # fold dropout scale into BN affine
    w_t = jnp.zeros((k, hp), jnp.bfloat16).at[:, :h].set(
        jnp.transpose(w).astype(jnp.bfloat16))
    gamma_p = jnp.zeros((1, hp), jnp.float32).at[0, :h].set(gamma * keep_scale)
    beta_p = jnp.zeros((1, hp), jnp.float32).at[0, :h].set(beta * keep_scale)
    return {"w_t": w_t, "gamma_p": gamma_p, "beta_p": beta_p, "h": h, "hp": hp}


def fx_forward(x, params, seed, *, use_hw_prng=False):
    """Forward of FX.EnE: Linear -> BatchNorm1d(train) -> ReLU -> Dropout(train).

    x: (B, input_dim) float32; params: output of prepare_fx_params; seed: python int.
    """
    b, k = x.shape
    h, hp = params["h"], params["hp"]
    tile_h = _pick_tile_h(hp, b, k)
    grid = (hp // tile_h,)

    kernel = functools.partial(_fx_kernel, tile_h=tile_h, total_h=hp,
                               use_hw_prng=use_hw_prng)
    seed_arr = jnp.asarray([seed], dtype=jnp.int32)

    out = pl.pallas_call(
        kernel,
        out_shape=jax.ShapeDtypeStruct((b, hp), jnp.float32),
        grid=grid,
        in_specs=[
            pl.BlockSpec((b, k), lambda j: (0, 0)),             # x: resident every step
            pl.BlockSpec((k, tile_h), lambda j: (0, j)),         # W^T tile (bf16)
            pl.BlockSpec((1, tile_h), lambda j: (0, j)),         # gamma' tile
            pl.BlockSpec((1, tile_h), lambda j: (0, j)),         # beta' tile
            pl.BlockSpec(memory_space=pltpu.MemorySpace.SMEM),   # seed (1,) int32
        ],
        out_specs=pl.BlockSpec((b, tile_h), lambda j: (0, j)),
        compiler_params=pltpu.CompilerParams(
            dimension_semantics=("parallel",),        # megacore split on v7x
            vmem_limit_bytes=64 * 1024 * 1024,        # raise v5e/v6e scoped default
        ),
    )(x.astype(jnp.bfloat16), params["w_t"], params["gamma_p"], params["beta_p"],
      seed_arr)

    return out[:, :h]


if __name__ == "__main__":
    B, INPUT_DIM, H_DIM = 8, 32, 64   # z_dim unused in FX.forward

    key = jax.random.PRNGKey(0)
    kx, kw, kb = jax.random.split(key, 3)

    x = jax.random.normal(kx, (B, INPUT_DIM), dtype=jnp.float32)

    # Deterministic init mirroring torch.nn.Linear's U(-1/sqrt(in), 1/sqrt(in))
    bound = 1.0 / (INPUT_DIM ** 0.5)
    w = jax.random.uniform(kw, (H_DIM, INPUT_DIM), minval=-bound, maxval=bound,
                           dtype=jnp.float32)
    b = jax.random.uniform(kb, (H_DIM,), minval=-bound, maxval=bound,
                           dtype=jnp.float32)
    gamma = jnp.ones((H_DIM,), dtype=jnp.float32)   # BatchNorm1d weight init
    beta = jnp.zeros((H_DIM,), dtype=jnp.float32)   # BatchNorm1d bias init

    # Linear bias `b` is dropped on purpose: exactly cancelled by train-mode BN.
    params = prepare_fx_params(w, gamma, beta)
    out = fx_forward(x, params, seed=12345)         # hash dropout (interpret-safe default)
    out = jax.block_until_ready(out)

    assert out.shape == (B, H_DIM)
    assert bool(jnp.all(jnp.isfinite(out)))
    assert bool(jnp.all(out >= 0.0))   # ReLU followed by zero-or-keep dropout
    print("KERNEL_OK")
</pallas_src>

<mosaic_0001>
module attributes {stable_mosaic.version = 11 : i64} {
  func.func @_fx_kernel(%arg0: i32, %arg1: memref<8x32xbf16, #tpu.memory_space<vmem>>, %arg2: memref<32x128xbf16, #tpu.memory_space<vmem>>, %arg3: memref<1x128xf32, #tpu.memory_space<vmem>>, %arg4: memref<1x128xf32, #tpu.memory_space<vmem>>, %arg5: memref<1xi32, #tpu.memory_space<smem>>, %arg6: memref<8x128xf32, #tpu.memory_space<vmem>>) attributes {dimension_semantics = [#tpu.dimension_semantics<parallel>], iteration_bounds = array<i64: 1>, scalar_prefetch = 0 : i64, scratch_operands = 0 : i64, tpu.core_type = #tpu.core_type<tc>, window_params = [{pipeline_mode = #tpu.pipeline_mode<synchronous>, transform_indices = @transform_0, window_bounds = array<i64: 8, 32>}, {transform_indices = @transform_1, window_bounds = array<i64: 32, 128>}, {transform_indices = @transform_2, window_bounds = array<i64: 1, 128>}, {transform_indices = @transform_3, window_bounds = array<i64: 1, 128>}, {transform_indices = @transform_4, window_bounds = array<i64: 1>}, {transform_indices = @transform_5, window_bounds = array<i64: 8, 128>}]} {
    %c0 = arith.constant 0 : index
    %c0_0 = arith.constant 0 : index
    %0 = vector.load %arg1[%c0, %c0_0] : memref<8x32xbf16, #tpu.memory_space<vmem>>, vector<8x32xbf16>
    %c0_1 = arith.constant 0 : index
    %c0_2 = arith.constant 0 : index
    %1 = vector.load %arg2[%c0_1, %c0_2] : memref<32x128xbf16, #tpu.memory_space<vmem>>, vector<32x128xbf16>
    %cst = arith.constant dense<0.000000e+00> : vector<8x128xf32>
    %2 = tpu.matmul %0, %1, %cst {dimension_numbers = #tpu.dot_dimension_numbers<[1], [0], [0], [1], [0, 0, 1, 1], [], []>} : vector<8x32xbf16>, vector<32x128xbf16>, vector<8x128xf32> -> vector<8x128xf32>
    %cst_3 = arith.constant dense<0.000000e+00> : vector<128xf32>
    %3 = vector.multi_reduction <add>, %2, %cst_3 [0] : vector<8x128xf32> to vector<128xf32>
    %4 = vector.shape_cast %3 : vector<128xf32> to vector<1x128xf32>
    %cst_4 = arith.constant 1.250000e-01 : f32
    %5 = vector.broadcast %cst_4 : f32 to vector<1x128xf32>
    %6 = arith.mulf %4, %5 : vector<1x128xf32>
    %7 = arith.mulf %2, %2 : vector<8x128xf32>
    %cst_5 = arith.constant dense<0.000000e+00> : vector<128xf32>
    %8 = vector.multi_reduction <add>, %7, %cst_5 [0] : vector<8x128xf32> to vector<128xf32>
    %9 = vector.shape_cast %8 : vector<128xf32> to vector<1x128xf32>
    %cst_6 = arith.constant 1.250000e-01 : f32
    %10 = vector.broadcast %cst_6 : f32 to vector<1x128xf32>
    %11 = arith.mulf %9, %10 : vector<1x128xf32>
    %12 = arith.mulf %6, %6 : vector<1x128xf32>
    %13 = arith.subf %11, %12 : vector<1x128xf32>
    %cst_7 = arith.constant 0.000000e+00 : f32
    %14 = vector.broadcast %cst_7 : f32 to vector<1x128xf32>
    %15 = arith.maximumf %13, %14 : vector<1x128xf32>
    %c0_8 = arith.constant 0 : index
    %c0_9 = arith.constant 0 : index
    %16 = vector.load %arg3[%c0_8, %c0_9] : memref<1x128xf32, #tpu.memory_space<vmem>>, vector<1x128xf32>
    %cst_10 = arith.constant 9.99999974E-6 : f32
    %17 = vector.broadcast %cst_10 : f32 to vector<1x128xf32>
    %18 = arith.addf %15, %17 : vector<1x128xf32>
    %19 = math.rsqrt %18 : vector<1x128xf32>
    %20 = arith.mulf %16, %19 : vector<1x128xf32>
    %c0_11 = arith.constant 0 : index
    %c0_12 = arith.constant 0 : index
    %21 = vector.load %arg4[%c0_11, %c0_12] : memref<1x128xf32, #tpu.memory_space<vmem>>, vector<1x128xf32>
    %22 = arith.mulf %6, %20 : vector<1x128xf32>
    %23 = arith.subf %21, %22 : vector<1x128xf32>
    %24 = vector.broadcast %20 : vector<1x128xf32> to vector<8x128xf32>
    %25 = arith.mulf %2, %24 : vector<8x128xf32>
    %26 = vector.broadcast %23 : vector<1x128xf32> to vector<8x128xf32>
    %27 = arith.addf %25, %26 : vector<8x128xf32>
    %cst_13 = arith.constant 0.000000e+00 : f32
    %28 = vector.broadcast %cst_13 : f32 to vector<8x128xf32>
    %29 = arith.maximumf %27, %28 : vector<8x128xf32>
    %30 = tpu.iota {dimensions = array<i32: 0>} : vector<8x128xi32>
    %31 = tpu.iota {dimensions = array<i32: 1>} : vector<8x128xi32>
    %c128_i32 = arith.constant 128 : i32
    %32 = arith.muli %arg0, %c128_i32 : i32
    %33 = vector.broadcast %32 : i32 to vector<8x128xi32>
    %34 = arith.addi %31, %33 : vector<8x128xi32>
    %c128_i32_14 = arith.constant 128 : i32
    %35 = vector.broadcast %c128_i32_14 : i32 to vector<8x128xi32>
    %36 = arith.muli %30, %35 : vector<8x128xi32>
    %37 = arith.addi %36, %34 : vector<8x128xi32>
    %c0_15 = arith.constant 0 : index
    %38 = memref.load %arg5[%c0_15] : memref<1xi32, #tpu.memory_space<smem>>
    %c-1640531527_i32 = arith.constant -1640531527 : i32
    %39 = arith.muli %38, %c-1640531527_i32 : i32
    %40 = vector.broadcast %39 : i32 to vector<8x128xi32>
    %41 = arith.xori %37, %40 : vector<8x128xi32>
    %c16_i32 = arith.constant 16 : i32
    %42 = vector.broadcast %c16_i32 : i32 to vector<8x128xi32>
    %43 = arith.shrui %41, %42 : vector<8x128xi32>
    %44 = arith.xori %41, %43 : vector<8x128xi32>
    %c-2048144789_i32 = arith.constant -2048144789 : i32
    %45 = vector.broadcast %c-2048144789_i32 : i32 to vector<8x128xi32>
    %46 = arith.muli %44, %45 : vector<8x128xi32>
    %c13_i32 = arith.constant 13 : i32
    %47 = vector.broadcast %c13_i32 : i32 to vector<8x128xi32>
    %48 = arith.shrui %46, %47 : vector<8x128xi32>
    %49 = arith.xori %46, %48 : vector<8x128xi32>
    %c-1028477387_i32 = arith.constant -1028477387 : i32
    %50 = vector.broadcast %c-1028477387_i32 : i32 to vector<8x128xi32>
    %51 = arith.muli %49, %50 : vector<8x128xi32>
    %c16_i32_16 = arith.constant 16 : i32
    %52 = vector.broadcast %c16_i32_16 : i32 to vector<8x128xi32>
    %53 = arith.shrui %51, %52 : vector<8x128xi32>
    %54 = arith.xori %51, %53 : vector<8x128xi32>
    %c429496730_i32 = arith.constant 429496730 : i32
    %55 = vector.broadcast %c429496730_i32 : i32 to vector<8x128xi32>
    %56 = arith.cmpi uge, %54, %55 : vector<8x128xi32>
    %cst_17 = arith.constant 0.000000e+00 : f32
    %57 = vector.broadcast %cst_17 : f32 to vector<8x128xf32>
    %58 = arith.select %56, %29, %57 : vector<8x128xi1>, vector<8x128xf32>
    %c0_18 = arith.constant 0 : index
    %c0_19 = arith.constant 0 : index
    %59 = vector.load %arg6[%c0_18, %c0_19] : memref<8x128xf32, #tpu.memory_space<vmem>>, vector<8x128xf32>
    tpu.vector_store %arg6[%c0_18, %c0_19], %58 {strides = array<i32>} : memref<8x128xf32, #tpu.memory_space<vmem>>, vector<8x128xf32>,
    return
  }
  func.func @transform_0(%arg0: i32) -> (i32, i32) {
    %c0_i32 = arith.constant 0 : i32
    %c0_i32_0 = arith.constant 0 : i32
    %c0_i32_1 = arith.constant 0 : i32
    return %c0_i32, %c0_i32_0 : i32, i32
  }
  func.func @transform_1(%arg0: i32) -> (i32, i32) {
    %c0_i32 = arith.constant 0 : i32
    %c0_i32_0 = arith.constant 0 : i32
    return %c0_i32, %arg0 : i32, i32
  }
  func.func @transform_2(%arg0: i32) -> (i32, i32) {
    %c0_i32 = arith.constant 0 : i32
    %c0_i32_0 = arith.constant 0 : i32
    return %c0_i32, %arg0 : i32, i32
  }
  func.func @transform_3(%arg0: i32) -> (i32, i32) {
    %c0_i32 = arith.constant 0 : i32
    %c0_i32_0 = arith.constant 0 : i32
    return %c0_i32, %arg0 : i32, i32
  }
  func.func @transform_4(%arg0: i32) -> i32 {
    %c0_i32 = arith.constant 0 : i32
    %c0_i32_0 = arith.constant 0 : i32
    return %c0_i32 : i32
  }
  func.func @transform_5(%arg0: i32) -> (i32, i32) {
    %c0_i32 = arith.constant 0 : i32
    %c0_i32_0 = arith.constant 0 : i32
    return %c0_i32, %arg0 : i32, i32
  }
}

</mosaic_0001>

<llo_original>
// kernel: tpu_custom_call.1
$region0: #{tpu_custom_call.1}
  #allocation0 [shape = 'u32[]', space=smem, size = 0x4, offset = 0x4, fixed_abs, tag = 'smem constant byte address 0x4 - core index']
  #allocation1 [shape = 'u32[144,128]{1,0:T(1,128)}', space=vmem, size = 0x12000, scoped, tag = 'internal scratch']
  #allocation2 [shape = 's32[1]{0:T(128)S(6)}', space=smem, size = 0x200, scoped, tag = 'scoped memory for tpu_custom_call.1']
  %s0 = inlined_call_operand.hbm [shape: bf16[8,32], index: 0, kind: input, shape index: {}]
  %s1 = inlined_call_operand.hbm [shape: bf16[32,128], index: 1, kind: input, shape index: {}]
  %s2 = inlined_call_operand.hbm [shape: f32[1,128], index: 2, kind: input, shape index: {}]
  %s3 = inlined_call_operand.hbm [shape: f32[1,128], index: 3, kind: input, shape index: {}]
  %s4 = inlined_call_operand.<no memory space> [shape: s32[1], index: 4, kind: input, shape index: {}]
  %s5 = inlined_call_operand.hbm [shape: f32[8,128], index: 5, kind: output, shape index: {}]
  %s6 = sld [smem:[#allocation0]]
  $region46: #{tpu_custom_call.1} parent=0
    _
  %s8 = ssub.s32 1, %s6
  %s9 = scalar_select 0, %s8, %s6
  %10 = sst [smem:[#allocation2]] %s4
  $region1: #{tpu_custom_call.1} parent=0
    #allocation3 [shape = 'u8[2048]{0}', space=vmem, size = 0x800, scoped, tag = 'input window, operand 0, single buffered']
    #allocation4 [shape = 's32[1]{0}', space=sflag, size = 0x4, scoped, tag = 'scoped memory for tpu_custom_call.1']
    #allocation5 [shape = 's32[1]{0}', space=sflag, size = 0x4, scoped, tag = 'scoped memory for tpu_custom_call.1']
    #allocation6 [shape = 'u8[8192]{0}', space=vmem, size = 0x2000, scoped, tag = 'input window, operand 1, single buffered']
    #allocation7 [shape = 's32[1]{0}', space=sflag, size = 0x4, scoped, tag = 'scoped memory for tpu_custom_call.1']
    #allocation8 [shape = 'u8[512]{0}', space=vmem, size = 0x400, scoped, tag = 'input window, operand 2, single buffered']
    #allocation9 [shape = 'u8[512]{0}', space=vmem, size = 0x400, scoped, tag = 'input window, operand 3, single buffered']
    #allocation10 [shape = 's32[1]{0}', space=sflag, size = 0x4, scoped, tag = 'scoped memory for tpu_custom_call.1']
    #allocation11 [shape = 'u8[4096]{0}', space=vmem, size = 0x1000, scoped, tag = 'output window, operand 0, single buffered']
    %11 = vsyncpa [#allocation4], 0
    %12 = vsyncpa [#allocation7], 0
    %13 = vsyncpa [#allocation10], 0
    %14 = vsyncpa [#allocation5], 0
    // Predicated region
    $region2: #{tpu_custom_call.1} parent=1 // pred_check
      _
    $region3: #{tpu_custom_call.1} parent=1 // pred_check_branch
      %16 = sbr.rel (0) target = $region5
    $region4: #{tpu_custom_call.1} parent=1 // pred_region
      %s18 = ssub.s32 64, 64
      %19 = vsyncadd [#allocation4], %s18
      %s21 = sshll.u32 [#allocation3], 4
      %s22 = int_to_ptr.vmem [resolvable:$true] %s21
      %24 = dma.hbm_to_vmem [thread:$0]  %s0, 64, %s22, [#allocation4]
    $region5: #{tpu_custom_call.1} parent=1 // pred_fallthru
      _
    // Predicated region
    $region6: #{tpu_custom_call.1} parent=1 // pred_check
      _
    $region7: #{tpu_custom_call.1} parent=1 // pred_check_branch
      %26 = sbr.rel (0) target = $region9
    $region8: #{tpu_custom_call.1} parent=1 // pred_region
      %s28 = ssub.s32 256, 256
      %29 = vsyncadd [#allocation7], %s28
      %s30 = sshll.u32 [#allocation6], 4
      %s31 = int_to_ptr.vmem [resolvable:$true] %s30
      %36 = dma.hbm_to_vmem [thread:$0]  %s1, 256, %s31, [#allocation7], 64, 64, 4
    $region9: #{tpu_custom_call.1} parent=1 // pred_fallthru
      _
    // Predicated region
    $region10: #{tpu_custom_call.1} parent=1 // pred_check
      _
    $region11: #{tpu_custom_call.1} parent=1 // pred_check_branch
      %38 = sbr.rel (0) target = $region13
    $region12: #{tpu_custom_call.1} parent=1 // pred_region
      %s40 = ssub.s32 16, 16
      %41 = vsyncadd [#allocation7], %s40
      %s43 = sshll.u32 [#allocation8], 4
      %s44 = int_to_ptr.vmem [resolvable:$true] %s43
      %46 = dma.hbm_to_vmem [thread:$0]  %s2, 16, %s44, [#allocation7]
    $region13: #{tpu_custom_call.1} parent=1 // pred_fallthru
      _
    // Predicated region
    $region14: #{tpu_custom_call.1} parent=1 // pred_check
      _
    $region15: #{tpu_custom_call.1} parent=1 // pred_check_branch
      %48 = sbr.rel (0) target = $region17
    $region16: #{tpu_custom_call.1} parent=1 // pred_region
      %s50 = ssub.s32 16, 16
      %51 = vsyncadd [#allocation10], %s50
      %s53 = sshll.u32 [#allocation9], 4
      %s54 = int_to_ptr.vmem [resolvable:$true] %s53
      %56 = dma.hbm_to_vmem [thread:$0]  %s3, 16, %s54, [#allocation10]
    $region17: #{tpu_custom_call.1} parent=1 // pred_fallthru
      _
    // Predicated region
    $region18: #{tpu_custom_call.1} parent=1 // pred_check
      _
    $region19: #{tpu_custom_call.1} parent=1 // pred_check_branch
      %58 = sbr.rel (0) target = $region21
    $region20: #{tpu_custom_call.1} parent=1 // pred_region
      _
    $region21: #{tpu_custom_call.1} parent=1 // pred_fallthru
      _
    // Predicated region
    $region22: #{tpu_custom_call.1} parent=1 // pred_check
      _
    $region23: #{tpu_custom_call.1} parent=1 // pred_check_branch
      %60 = sbr.rel (0) target = $region25
    $region24: #{tpu_custom_call.1} parent=1 // pred_region
      %61 = dma.done [#allocation4], 64
    $region25: #{tpu_custom_call.1} parent=1 // pred_fallthru
      _
    // Predicated region
    $region26: #{tpu_custom_call.1} parent=1 // pred_check
      _
    $region27: #{tpu_custom_call.1} parent=1 // pred_check_branch
      %63 = sbr.rel (0) target = $region29
    $region28: #{tpu_custom_call.1} parent=1 // pred_region
      %64 = dma.done [#allocation7], 256
    $region29: #{tpu_custom_call.1} parent=1 // pred_fallthru
      _
    // Predicated region
    $region30: #{tpu_custom_call.1} parent=1 // pred_check
      _
    $region31: #{tpu_custom_call.1} parent=1 // pred_check_branch
      %66 = sbr.rel (0) target = $region33
    $region32: #{tpu_custom_call.1} parent=1 // pred_region
      %67 = dma.done [#allocation7], 16
    $region33: #{tpu_custom_call.1} parent=1 // pred_fallthru
      _
    // Predicated region
    $region34: #{tpu_custom_call.1} parent=1 // pred_check
      _
    $region35: #{tpu_custom_call.1} parent=1 // pred_check_branch
      %69 = sbr.rel (0) target = $region37
    $region36: #{tpu_custom_call.1} parent=1 // pred_region
      %70 = dma.done [#allocation10], 16
    $region37: #{tpu_custom_call.1} parent=1 // pred_fallthru
      _
    %v72 = vld [vmem:[#allocation3] sm:$0xf]
    %v73 = vld [vmem:[#allocation6] sm:$0xf]
    %v74 = vld [vmem:[#allocation6 + $0x4] sm:$0xf]
    %v75 = vld [vmem:[#allocation6 + $0x8] sm:$0xf]
    %v76 = vld [vmem:[#allocation6 + $0xc] sm:$0xf]
    %v81 = vunpack.c.l.b16 %v73
    %v82 = vunpack.c.l.b16 %v74
    %v83 = vunpack.c.l.b16 %v75
    %v84 = vunpack.c.l.b16 %v76
    %v85 = vpack.c.b16 %v82, %v81
    %v86 = vpack.c.b16 %v84, %v83
    %vm89 = vcmask 261120
    %v91 = vsel %vm89, %v72, 0
    %93 = vmatprep.subr.bf16.mxu0 0
    %94 = vmatpush1.bf16.msra.mxu0 %v85
    %95 = vmatprep.subr.bf16.mxu0 0
    %96 = vmatpush1.bf16.msra.mxu0 %v86
    %97 = vmatprep.subr.bf16.mxu0 0
    %98 = vmatpush1.bf16.msra.mxu0 0
    %99 = vmatprep.subr.bf16.mxu0 0
    %100 = vmatpush1.bf16.msra.mxu0 0
    %101 = vmatprep.subr.bf16.mxu0 0
    %102 = vmatpush1.bf16.msra.mxu0 0
    %103 = vmatprep.subr.bf16.mxu0 0
    %104 = vmatpush1.bf16.msra.mxu0 0
    %105 = vmatprep.subr.bf16.mxu0 0
    %106 = vmatpush1.bf16.msra.mxu0 0
    %107 = vmatprep.subr.bf16.mxu0 0
    %108 = vmatpush1.bf16.msra.mxu0 0
    %109 = vmatprep.subr.bf16.mxu0 0
    %110 = vmatpush1.bf16.msra.mxu0 0
    %111 = vmatprep.subr.bf16.mxu0 0
    %112 = vmatpush1.bf16.msra.mxu0 0
    %113 = vmatprep.subr.bf16.mxu0 0
    %114 = vmatpush1.bf16.msra.mxu0 0
    %115 = vmatprep.subr.bf16.mxu0 0
    %116 = vmatpush1.bf16.msra.mxu0 0
    %117 = vmatprep.subr.bf16.mxu0 0
    %118 = vmatpush1.bf16.msra.mxu0 0
    %119 = vmatprep.subr.bf16.mxu0 0
    %120 = vmatpush1.bf16.msra.mxu0 0
    %121 = vmatprep.subr.bf16.mxu0 0
    %122 = vmatpush1.bf16.msra.mxu0 0
    %123 = vmatprep.subr.bf16.mxu0 0
    %124 = vmatpush1.bf16.msra.mxu0 0
    %125 = vmatprep.mubr.bf16.mxu0 0
    %126 = vmatmul.mubr.bf16.gmra.mrb[0].mxu0 %v91
    %v127 = vpop.f32.mrb[0].mxu0
    %v128 = vadd.f32 0.0, %v127
    %v129 = vpop.f32.mrb[0].mxu0
    %v130 = vpop.f32.mrb[0].mxu0
    %v131 = vpop.f32.mrb[0].mxu0
    %132 = vdwg.mxu0
    %v133 = vrot.slane %v128, 4
    %v134 = vadd.f32 %v128, %v133
    %v135 = vrot.slane %v134, 2
    %v136 = vadd.f32 %v134, %v135
    %v137 = vrot.slane %v136, 1
    %v138 = vadd.f32 %v136, %v137
    %v139 = vmul.f32 %v138, 0.125
    %v140 = vmul.f32 %v128, %v128
    %v141 = vrot.slane %v140, 4
    %v142 = vadd.f32 %v140, %v141
    %v143 = vrot.slane %v142, 2
    %v144 = vadd.f32 %v142, %v143
    %v145 = vrot.slane %v144, 1
    %v146 = vadd.f32 %v144, %v145
    %v147 = vmul.f32 %v146, 0.125
    %v148 = vmul.f32 %v139, %v139
    %v149 = vsub.f32 %v147, %v148
    %v150 = vmax.f32 %v149, 0.0
    %v151 = vld [vmem:[#allocation8] sm:$0x1]
    %v152 = vadd.f32 %v150, 1e-05
    %v153 = vrsqrt.pop %v152
    %v154 = vmul.f32 %v151, %v153
    %v155 = vld [vmem:[#allocation9] sm:$0x1]
    %v156 = vmul.f32 %v139, %v154
    %v157 = vsub.f32 %v155, %v156
    %v159 = vlaneseq
    %v160 = vshrl.u32 %v159, 7
    %v161 = vsub.s32 0, %v160
    %v162 = vrot.slane %v154, %v161
    %v164 = vmul.f32 %v128, %v162
    %v166 = vlaneseq
    %v167 = vshrl.u32 %v166, 7
    %v168 = vsub.s32 0, %v167
    %v169 = vrot.slane %v157, %v168
    %v171 = vadd.f32 %v164, %v169
    %v172 = vmax.f32 %v171, 0.0
    %v173 = vlaneseq
    %v174 = vshrl.u32 %v173, 7
    %v175 = vlaneseq
    %v176 = vand.u32 %v175, 127
    %s177 = smul.u32 0, 128
    %v178 = vstv %s177
    %v179 = vadd.s32 %v176, %v178
    %v180 = vmul.u32 %v174, 128
    %v181 = vadd.s32 %v180, %v179
    %s182 = sld [smem:[#allocation2]]
    %s183 = smul.u32 %s182, 2654435769
    %v184 = vstv %s183
    %v185 = vxor.u32 %v181, %v184
    %v186 = vshrl.u32 %v185, 16
    %v187 = vxor.u32 %v185, %v186
    %v188 = vmul.u32 %v187, 2246822507
    %v189 = vshrl.u32 %v188, 13
    %v190 = vxor.u32 %v188, %v189
    %v191 = vmul.u32 %v190, 3266489909
    %v192 = vshrl.u32 %v191, 16
    %v193 = vxor.u32 %v191, %v192
    %vm194 = vcmp.ge.u32.totalorder %v193, 429496730
    %v195 = vsel %vm194, %v172, 0.0
    %196 = vst [vmem:[#allocation11] sm:$0xff] %v195
    // Predicated region
    $region38: #{tpu_custom_call.1} parent=1 // pred_check
      _
    $region39: #{tpu_custom_call.1} parent=1 // pred_check_branch
      %198 = sbr.rel (0) target = $region41
    $region40: #{tpu_custom_call.1} parent=1 // pred_region
      %s200 = ssub.s32 128, 128
      %201 = vsyncadd [#allocation5], %s200
      %s203 = sshll.u32 [#allocation11], 4
      %s204 = int_to_ptr.vmem [resolvable:$true] %s203
      %206 = dma.vmem_to_hbm [thread:$0]  %s204, 128, %s5, [#allocation5]
    $region41: #{tpu_custom_call.1} parent=1 // pred_fallthru
      _
    // Predicated region
    $region42: #{tpu_custom_call.1} parent=1 // pred_check
      _
    $region43: #{tpu_custom_call.1} parent=1 // pred_check_branch
      %208 = sbr.rel (0) target = $region45
    $region44: #{tpu_custom_call.1} parent=1 // pred_region
      %209 = dma.done [#allocation5], 128
    $region45: #{tpu_custom_call.1} parent=1 // pred_fallthru
      _
    %210 = vsyncpa [#allocation4], 1
    %211 = vsyncpa [#allocation7], 1
    %212 = vsyncpa [#allocation10], 1
    %213 = vsyncpa [#allocation5], 1

</llo_original>
